<compile_context>
chip_gen: v5e
topology: v5e:2x2
jax: 0.10.0
libtpu: 0.0.40
codegen_flags: <defaults>
</compile_context>

<pallas_src>
import functools

import numpy as np
import jax
import jax.numpy as jnp
from jax import lax
from jax.experimental import pallas as pl
from jax.experimental.pallas import tpu as pltpu

# murmur3 fmix32 constants (two's-complement signed-int32 values).
_M1 = -2048144789    # 0x85EBCA6B
_M2 = -1028477387    # 0xC2B2AE35
_GOLD = -1640531527  # 0x9E3779B9
_SALT = 1663755691   # 0x632BE5AB


def _mix32(x):
    """murmur3 finalizer: full-avalanche 32-bit mix (int32, logical shifts)."""
    x = x ^ lax.shift_right_logical(x, 16)
    x = x * jnp.int32(_M1)
    x = x ^ lax.shift_right_logical(x, 13)
    x = x * jnp.int32(_M2)
    x = x ^ lax.shift_right_logical(x, 16)
    return x


def _rr_kernel(seed_ref, thr_ref, arr_ref, out_ref, *, k: int, bm: int, cols: int):
    # seed_ref: SMEM (1,) int32   (scalar prefetch)
    # thr_ref:  SMEM (k,) int32   (scalar prefetch) -- flip thresholds in [0, 2^31)
    # arr_ref:  VMEM (bm, cols) int32 tile of labels
    # out_ref:  VMEM (bm, cols) int32
    labels = arr_ref[...]

    # Unique 32-bit counter per element (tile offset folded in => independent
    # random streams across grid steps / cores).
    row = lax.broadcasted_iota(jnp.int32, labels.shape, 0)
    col = lax.broadcasted_iota(jnp.int32, labels.shape, 1)
    idx = (pl.program_id(0) * jnp.int32(bm) + row) * jnp.int32(cols) + col

    x = _mix32(idx ^ (seed_ref[0] * jnp.int32(_GOLD)))

    # Per-element integer flip threshold via k scalar selects (k is tiny).
    thr = jnp.zeros(labels.shape, jnp.int32)
    for c in range(k):
        thr = jnp.where(labels == c, thr_ref[c], thr)

    # Reference: keep if u > ps[label]  <=>  flip iff 31-bit uniform < thr[label].
    flip = (x & jnp.int32(0x7FFFFFFF)) < thr

    # Second decorrelated word -> uniform r in {0..k-2} via fixed-point
    # multiply-high, then skip over the current label (guarantees resp != label).
    y = _mix32(x ^ jnp.int32(_SALT))
    u16 = y & jnp.int32(0xFFFF)
    r = lax.shift_right_logical(u16 * jnp.int32(k - 1), 16)
    resp = r + (r >= labels).astype(jnp.int32)

    out_ref[...] = jnp.where(flip, resp, labels)


def random_response(arr, ps, num_classes: int, seed: int = 0,
                    *, cols: int = 512, max_block_rows: int = 256):
    """arr: 1-D integer label array (N,). Returns privatized labels, same shape/dtype."""
    assert num_classes >= 2, "randomized response needs k >= 2 classes"
    assert len(ps) == num_classes

    n = arr.shape[0]
    out_dtype = arr.dtype
    arr_i32 = arr.astype(jnp.int32)

    # Sublane+lane-dense slab: (rows, cols) with rows a multiple of the block height.
    rows = max(8, pl.cdiv(n, cols))
    if rows >= max_block_rows:
        bm = max_block_rows
    else:
        bm = ((rows + 7) // 8) * 8
    rows = ((rows + bm - 1) // bm) * bm
    pad = rows * cols - n
    arr2 = jnp.pad(arr_i32, (0, pad)).reshape(rows, cols)

    # Integer flip thresholds: flip iff 31-bit uniform < round(ps[c] * 2^31).
    ps_np = np.asarray(ps, dtype=np.float64)
    thr_np = np.clip(np.round(ps_np * 2147483648.0), 0.0, 2147483647.0)
    thr = jnp.asarray(thr_np.astype(np.int64).astype(np.int32))
    seed_arr = jnp.asarray([seed], jnp.int32)

    grid = (rows // bm,)
    out = pl.pallas_call(
        functools.partial(_rr_kernel, k=num_classes, bm=bm, cols=cols),
        out_shape=jax.ShapeDtypeStruct((rows, cols), jnp.int32),
        grid_spec=pltpu.PrefetchScalarGridSpec(
            num_scalar_prefetch=2,                # seed, thr -> SMEM
            grid=grid,
            in_specs=[pl.BlockSpec((bm, cols), lambda i, seed, thr: (i, 0))],
            out_specs=pl.BlockSpec((bm, cols), lambda i, seed, thr: (i, 0)),
        ),
        compiler_params=pltpu.CompilerParams(
            dimension_semantics=("parallel",),    # independent tiles: shard across TCs
        ),
    )(seed_arr, thr, arr2)

    return out.reshape(-1)[:n].astype(out_dtype)


if __name__ == "__main__":
    key = jax.random.PRNGKey(0)
    num_classes = 5
    ps = [0.3, 0.3, 0.3, 0.3, 0.3]          # per-class flip probabilities
    n = 128
    labels = jax.random.randint(key, (n,), 0, num_classes, dtype=jnp.int32)

    out = random_response(labels, ps, num_classes, seed=0)
    out = jax.block_until_ready(out)

    # sanity: shape/dtype preserved, outputs are valid class indices
    assert out.shape == labels.shape and out.dtype == labels.dtype
    assert bool(jnp.all((out >= 0) & (out < num_classes)))

    print("KERNEL_OK")
</pallas_src>

<mosaic_0001>
module attributes {stable_mosaic.version = 11 : i64} {
  func.func @_rr_kernel(%arg0: i32, %arg1: memref<1xi32, #tpu.memory_space<smem>>, %arg2: memref<5xi32, #tpu.memory_space<smem>>, %arg3: memref<8x512xi32, #tpu.memory_space<vmem>>, %arg4: memref<8x512xi32, #tpu.memory_space<vmem>>) attributes {dimension_semantics = [#tpu.dimension_semantics<parallel>], iteration_bounds = array<i64: 1>, scalar_prefetch = 2 : i64, scratch_operands = 0 : i64, tpu.core_type = #tpu.core_type<tc>, window_params = [{transform_indices = @transform_0, window_bounds = array<i64: 8, 512>}, {transform_indices = @transform_1, window_bounds = array<i64: 8, 512>}]} {
    %c0 = arith.constant 0 : index
    %c0_0 = arith.constant 0 : index
    %0 = vector.load %arg3[%c0, %c0_0] : memref<8x512xi32, #tpu.memory_space<vmem>>, vector<8x512xi32>
    %1 = tpu.iota {dimensions = array<i32: 0>} : vector<8x512xi32>
    %2 = tpu.iota {dimensions = array<i32: 1>} : vector<8x512xi32>
    %c8_i32 = arith.constant 8 : i32
    %3 = arith.muli %arg0, %c8_i32 : i32
    %4 = vector.broadcast %3 : i32 to vector<8x512xi32>
    %5 = arith.addi %4, %1 : vector<8x512xi32>
    %c512_i32 = arith.constant 512 : i32
    %6 = vector.broadcast %c512_i32 : i32 to vector<8x512xi32>
    %7 = arith.muli %5, %6 : vector<8x512xi32>
    %8 = arith.addi %7, %2 : vector<8x512xi32>
    %c0_1 = arith.constant 0 : index
    %9 = memref.load %arg1[%c0_1] : memref<1xi32, #tpu.memory_space<smem>>
    %c-1640531527_i32 = arith.constant -1640531527 : i32
    %10 = arith.muli %9, %c-1640531527_i32 : i32
    %11 = vector.broadcast %10 : i32 to vector<8x512xi32>
    %12 = arith.xori %8, %11 : vector<8x512xi32>
    %c16_i32 = arith.constant 16 : i32
    %13 = vector.broadcast %c16_i32 : i32 to vector<8x512xi32>
    %14 = arith.shrui %12, %13 : vector<8x512xi32>
    %15 = arith.xori %12, %14 : vector<8x512xi32>
    %c-2048144789_i32 = arith.constant -2048144789 : i32
    %16 = vector.broadcast %c-2048144789_i32 : i32 to vector<8x512xi32>
    %17 = arith.muli %15, %16 : vector<8x512xi32>
    %c13_i32 = arith.constant 13 : i32
    %18 = vector.broadcast %c13_i32 : i32 to vector<8x512xi32>
    %19 = arith.shrui %17, %18 : vector<8x512xi32>
    %20 = arith.xori %17, %19 : vector<8x512xi32>
    %c-1028477387_i32 = arith.constant -1028477387 : i32
    %21 = vector.broadcast %c-1028477387_i32 : i32 to vector<8x512xi32>
    %22 = arith.muli %20, %21 : vector<8x512xi32>
    %c16_i32_2 = arith.constant 16 : i32
    %23 = vector.broadcast %c16_i32_2 : i32 to vector<8x512xi32>
    %24 = arith.shrui %22, %23 : vector<8x512xi32>
    %25 = arith.xori %22, %24 : vector<8x512xi32>
    %c0_i32 = arith.constant 0 : i32
    %26 = vector.broadcast %c0_i32 : i32 to vector<8x512xi32>
    %c0_i32_3 = arith.constant 0 : i32
    %27 = vector.broadcast %c0_i32_3 : i32 to vector<8x512xi32>
    %28 = arith.cmpi eq, %0, %27 : vector<8x512xi32>
    %c0_4 = arith.constant 0 : index
    %29 = memref.load %arg2[%c0_4] : memref<5xi32, #tpu.memory_space<smem>>
    %30 = vector.broadcast %29 : i32 to vector<8x512xi32>
    %31 = arith.select %28, %30, %26 : vector<8x512xi1>, vector<8x512xi32>
    %c1_i32 = arith.constant 1 : i32
    %32 = vector.broadcast %c1_i32 : i32 to vector<8x512xi32>
    %33 = arith.cmpi eq, %0, %32 : vector<8x512xi32>
    %c1 = arith.constant 1 : index
    %34 = memref.load %arg2[%c1] : memref<5xi32, #tpu.memory_space<smem>>
    %35 = vector.broadcast %34 : i32 to vector<8x512xi32>
    %36 = arith.select %33, %35, %31 : vector<8x512xi1>, vector<8x512xi32>
    %c2_i32 = arith.constant 2 : i32
    %37 = vector.broadcast %c2_i32 : i32 to vector<8x512xi32>
    %38 = arith.cmpi eq, %0, %37 : vector<8x512xi32>
    %c2 = arith.constant 2 : index
    %39 = memref.load %arg2[%c2] : memref<5xi32, #tpu.memory_space<smem>>
    %40 = vector.broadcast %39 : i32 to vector<8x512xi32>
    %41 = arith.select %38, %40, %36 : vector<8x512xi1>, vector<8x512xi32>
    %c3_i32 = arith.constant 3 : i32
    %42 = vector.broadcast %c3_i32 : i32 to vector<8x512xi32>
    %43 = arith.cmpi eq, %0, %42 : vector<8x512xi32>
    %c3 = arith.constant 3 : index
    %44 = memref.load %arg2[%c3] : memref<5xi32, #tpu.memory_space<smem>>
    %45 = vector.broadcast %44 : i32 to vector<8x512xi32>
    %46 = arith.select %43, %45, %41 : vector<8x512xi1>, vector<8x512xi32>
    %c4_i32 = arith.constant 4 : i32
    %47 = vector.broadcast %c4_i32 : i32 to vector<8x512xi32>
    %48 = arith.cmpi eq, %0, %47 : vector<8x512xi32>
    %c4 = arith.constant 4 : index
    %49 = memref.load %arg2[%c4] : memref<5xi32, #tpu.memory_space<smem>>
    %50 = vector.broadcast %49 : i32 to vector<8x512xi32>
    %51 = arith.select %48, %50, %46 : vector<8x512xi1>, vector<8x512xi32>
    %c2147483647_i32 = arith.constant 2147483647 : i32
    %52 = vector.broadcast %c2147483647_i32 : i32 to vector<8x512xi32>
    %53 = arith.andi %25, %52 : vector<8x512xi32>
    %54 = arith.cmpi slt, %53, %51 : vector<8x512xi32>
    %c1663755691_i32 = arith.constant 1663755691 : i32
    %55 = vector.broadcast %c1663755691_i32 : i32 to vector<8x512xi32>
    %56 = arith.xori %25, %55 : vector<8x512xi32>
    %c16_i32_5 = arith.constant 16 : i32
    %57 = vector.broadcast %c16_i32_5 : i32 to vector<8x512xi32>
    %58 = arith.shrui %56, %57 : vector<8x512xi32>
    %59 = arith.xori %56, %58 : vector<8x512xi32>
    %c-2048144789_i32_6 = arith.constant -2048144789 : i32
    %60 = vector.broadcast %c-2048144789_i32_6 : i32 to vector<8x512xi32>
    %61 = arith.muli %59, %60 : vector<8x512xi32>
    %c13_i32_7 = arith.constant 13 : i32
    %62 = vector.broadcast %c13_i32_7 : i32 to vector<8x512xi32>
    %63 = arith.shrui %61, %62 : vector<8x512xi32>
    %64 = arith.xori %61, %63 : vector<8x512xi32>
    %c-1028477387_i32_8 = arith.constant -1028477387 : i32
    %65 = vector.broadcast %c-1028477387_i32_8 : i32 to vector<8x512xi32>
    %66 = arith.muli %64, %65 : vector<8x512xi32>
    %c16_i32_9 = arith.constant 16 : i32
    %67 = vector.broadcast %c16_i32_9 : i32 to vector<8x512xi32>
    %68 = arith.shrui %66, %67 : vector<8x512xi32>
    %69 = arith.xori %66, %68 : vector<8x512xi32>
    %c65535_i32 = arith.constant 65535 : i32
    %70 = vector.broadcast %c65535_i32 : i32 to vector<8x512xi32>
    %71 = arith.andi %69, %70 : vector<8x512xi32>
    %c4_i32_10 = arith.constant 4 : i32
    %72 = vector.broadcast %c4_i32_10 : i32 to vector<8x512xi32>
    %73 = arith.muli %71, %72 : vector<8x512xi32>
    %c16_i32_11 = arith.constant 16 : i32
    %74 = vector.broadcast %c16_i32_11 : i32 to vector<8x512xi32>
    %75 = arith.shrui %73, %74 : vector<8x512xi32>
    %76 = arith.cmpi sge, %75, %0 : vector<8x512xi32>
    %77 = arith.extui %76 : vector<8x512xi1> to vector<8x512xi32>
    %78 = arith.addi %75, %77 : vector<8x512xi32>
    %79 = arith.select %54, %78, %0 : vector<8x512xi1>, vector<8x512xi32>
    %c0_12 = arith.constant 0 : index
    %c0_13 = arith.constant 0 : index
    %80 = vector.load %arg4[%c0_12, %c0_13] : memref<8x512xi32, #tpu.memory_space<vmem>>, vector<8x512xi32>
    tpu.vector_store %arg4[%c0_12, %c0_13], %79 {strides = array<i32>} : memref<8x512xi32, #tpu.memory_space<vmem>>, vector<8x512xi32>,
    return
  }
  func.func @transform_0(%arg0: i32, %arg1: memref<1xi32, #tpu.memory_space<smem>>, %arg2: memref<5xi32, #tpu.memory_space<smem>>) -> (i32, i32) {
    %c0_i32 = arith.constant 0 : i32
    %c0_i32_0 = arith.constant 0 : i32
    return %arg0, %c0_i32 : i32, i32
  }
  func.func @transform_1(%arg0: i32, %arg1: memref<1xi32, #tpu.memory_space<smem>>, %arg2: memref<5xi32, #tpu.memory_space<smem>>) -> (i32, i32) {
    %c0_i32 = arith.constant 0 : i32
    %c0_i32_0 = arith.constant 0 : i32
    return %arg0, %c0_i32 : i32, i32
  }
}

</mosaic_0001>

<llo_original>
// kernel: tpu_custom_call.1
$region0: #{tpu_custom_call.1}
  #allocation0 [shape = 'u32[]', space=smem, size = 0x4, offset = 0x4, fixed_abs, tag = 'smem constant byte address 0x4 - core index']
  #allocation1 [shape = 'u32[72,128]{1,0:T(1,128)}', space=vmem, size = 0x9000, scoped, tag = 'internal scratch']
  #allocation2 [shape = 's32[1]{0}', space=sflag, size = 0x4, scoped, tag = 'scoped memory for tpu_custom_call.1']
  #allocation3 [shape = 's32[1]{0:T(128)S(6)}', space=smem, size = 0x200, scoped, tag = 'prefetched SMEM operand 0']
  #allocation4 [shape = 'u8[512]{0}', space=smem, size = 0x200, scoped, tag = 'prefetched SMEM operand 1']
  %s0 = inlined_call_operand.<no memory space> [shape: s32[1], index: 0, kind: input, shape index: {}]
  %s1 = inlined_call_operand.vmem [shape: s32[5], index: 1, kind: input, shape index: {}]
  %s2 = inlined_call_operand.hbm [shape: s32[8,512], index: 2, kind: input, shape index: {}]
  %s3 = inlined_call_operand.hbm [shape: s32[8,512], index: 3, kind: output, shape index: {}]
  %s4 = sld [smem:[#allocation0]]
  $region18: #{tpu_custom_call.1} parent=0
    _
  %s6 = ssub.s32 1, %s4
  %s7 = scalar_select 0, %s6, %s4
  %8 = sst [smem:[#allocation3]] %s0
  %s10 = sshll.u32 %s1, 4
  %s11 = int_to_ptr.vmem [resolvable:$true] %s10
  %13 = dma.vmem_to_smem %s11, 16, [#allocation4], [#allocation2]
  %15 = dma.done [#allocation2], 16
  %16 = sfence
  $region1: #{tpu_custom_call.1} parent=0
    #allocation5 [shape = 'u8[16384]{0}', space=vmem, size = 0x4000, scoped, tag = 'input window, operand 2, single buffered']
    #allocation6 [shape = 's32[1]{0}', space=sflag, size = 0x4, scoped, tag = 'scoped memory for tpu_custom_call.1']
    #allocation7 [shape = 's32[1]{0}', space=sflag, size = 0x4, scoped, tag = 'scoped memory for tpu_custom_call.1']
    #allocation8 [shape = 'u8[16384]{0}', space=vmem, size = 0x4000, scoped, tag = 'output window, operand 0, single buffered']
    %17 = vsyncpa [#allocation6], 0
    %18 = vsyncpa [#allocation7], 0
    // Predicated region
    $region2: #{tpu_custom_call.1} parent=1 // pred_check
      _
    $region3: #{tpu_custom_call.1} parent=1 // pred_check_branch
      %20 = sbr.rel (0) target = $region5
    $region4: #{tpu_custom_call.1} parent=1 // pred_region
      %22 = vsyncadd [#allocation6], 0
      %s24 = sshll.u32 %s2, 4
      %s25 = int_to_ptr.hbm [resolvable:$true] %s24
      %s26 = sshll.u32 [#allocation5], 4
      %s27 = int_to_ptr.vmem [resolvable:$true] %s26
      %29 = dma.hbm_to_vmem [thread:$0]  %s25, 512, %s27, [#allocation6]
    $region5: #{tpu_custom_call.1} parent=1 // pred_fallthru
      _
    // Predicated region
    $region6: #{tpu_custom_call.1} parent=1 // pred_check
      _
    $region7: #{tpu_custom_call.1} parent=1 // pred_check_branch
      %31 = sbr.rel (0) target = $region9
    $region8: #{tpu_custom_call.1} parent=1 // pred_region
      %33 = dma.done [#allocation6], 512
    $region9: #{tpu_custom_call.1} parent=1 // pred_fallthru
      _
    %v34 = vld [vmem:[#allocation5] sm:$0xff]
    %v35 = vld [vmem:[#allocation5 + $0x8] sm:$0xff]
    %v36 = vld [vmem:[#allocation5 + $0x10] sm:$0xff]
    %v37 = vld [vmem:[#allocation5 + $0x18] sm:$0xff]
    %v38 = vlaneseq
    %v39 = vshrl.u32 %v38, 7
    %v40 = vlaneseq
    %v41 = vand.u32 %v40, 127
    %v42 = vadd.s32 %v41, 128
    %v43 = vadd.s32 %v41, 256
    %v44 = vadd.s32 %v41, 384
    %s45 = smul.u32 0, 8
    %v46 = vstv %s45
    %v47 = vadd.s32 %v46, %v39
    %v48 = vmul.u32 %v47, 512
    %v49 = vadd.s32 %v48, %v41
    %v50 = vadd.s32 %v48, %v42
    %v51 = vadd.s32 %v48, %v43
    %v52 = vadd.s32 %v48, %v44
    %s53 = sld [smem:[#allocation3]]
    %s54 = smul.u32 %s53, 2654435769
    %v55 = vstv %s54
    %v56 = vxor.u32 %v49, %v55
    %v57 = vxor.u32 %v50, %v55
    %v58 = vxor.u32 %v51, %v55
    %v59 = vxor.u32 %v52, %v55
    %v60 = vshrl.u32 %v56, 16
    %v61 = vshrl.u32 %v57, 16
    %v62 = vshrl.u32 %v58, 16
    %v63 = vshrl.u32 %v59, 16
    %v64 = vxor.u32 %v56, %v60
    %v65 = vxor.u32 %v57, %v61
    %v66 = vxor.u32 %v58, %v62
    %v67 = vxor.u32 %v59, %v63
    %v68 = vmul.u32 %v64, 2246822507
    %v69 = vmul.u32 %v65, 2246822507
    %v70 = vmul.u32 %v66, 2246822507
    %v71 = vmul.u32 %v67, 2246822507
    %v72 = vshrl.u32 %v68, 13
    %v73 = vshrl.u32 %v69, 13
    %v74 = vshrl.u32 %v70, 13
    %v75 = vshrl.u32 %v71, 13
    %v76 = vxor.u32 %v68, %v72
    %v77 = vxor.u32 %v69, %v73
    %v78 = vxor.u32 %v70, %v74
    %v79 = vxor.u32 %v71, %v75
    %v80 = vmul.u32 %v76, 3266489909
    %v81 = vmul.u32 %v77, 3266489909
    %v82 = vmul.u32 %v78, 3266489909
    %v83 = vmul.u32 %v79, 3266489909
    %v84 = vshrl.u32 %v80, 16
    %v85 = vshrl.u32 %v81, 16
    %v86 = vshrl.u32 %v82, 16
    %v87 = vshrl.u32 %v83, 16
    %v88 = vxor.u32 %v80, %v84
    %v89 = vxor.u32 %v81, %v85
    %v90 = vxor.u32 %v82, %v86
    %v91 = vxor.u32 %v83, %v87
    %vm92 = vcmp.eq.s32.totalorder %v34, 0
    %vm93 = vcmp.eq.s32.totalorder %v35, 0
    %vm94 = vcmp.eq.s32.totalorder %v36, 0
    %vm95 = vcmp.eq.s32.totalorder %v37, 0
    %s96 = sld [smem:[#allocation4]]
    %v97 = vstv %s96
    %v98 = vsel %vm92, %v97, 0
    %v99 = vsel %vm93, %v97, 0
    %v100 = vsel %vm94, %v97, 0
    %v101 = vsel %vm95, %v97, 0
    %vm102 = vcmp.eq.s32.totalorder %v34, 1
    %vm103 = vcmp.eq.s32.totalorder %v35, 1
    %vm104 = vcmp.eq.s32.totalorder %v36, 1
    %vm105 = vcmp.eq.s32.totalorder %v37, 1
    %s106 = sld [smem:[#allocation4 + $0x1]]
    %v107 = vstv %s106
    %v108 = vsel %vm102, %v107, %v98
    %v109 = vsel %vm103, %v107, %v99
    %v110 = vsel %vm104, %v107, %v100
    %v111 = vsel %vm105, %v107, %v101
    %vm112 = vcmp.eq.s32.totalorder %v34, 2
    %vm113 = vcmp.eq.s32.totalorder %v35, 2
    %vm114 = vcmp.eq.s32.totalorder %v36, 2
    %vm115 = vcmp.eq.s32.totalorder %v37, 2
    %s116 = sld [smem:[#allocation4 + $0x2]]
    %v117 = vstv %s116
    %v118 = vsel %vm112, %v117, %v108
    %v119 = vsel %vm113, %v117, %v109
    %v120 = vsel %vm114, %v117, %v110
    %v121 = vsel %vm115, %v117, %v111
    %vm122 = vcmp.eq.s32.totalorder %v34, 3
    %vm123 = vcmp.eq.s32.totalorder %v35, 3
    %vm124 = vcmp.eq.s32.totalorder %v36, 3
    %vm125 = vcmp.eq.s32.totalorder %v37, 3
    %s126 = sld [smem:[#allocation4 + $0x3]]
    %v127 = vstv %s126
    %v128 = vsel %vm122, %v127, %v118
    %v129 = vsel %vm123, %v127, %v119
    %v130 = vsel %vm124, %v127, %v120
    %v131 = vsel %vm125, %v127, %v121
    %vm132 = vcmp.eq.s32.totalorder %v34, 4
    %vm133 = vcmp.eq.s32.totalorder %v35, 4
    %vm134 = vcmp.eq.s32.totalorder %v36, 4
    %vm135 = vcmp.eq.s32.totalorder %v37, 4
    %s136 = sld [smem:[#allocation4 + $0x4]]
    %v137 = vstv %s136
    %v138 = vsel %vm132, %v137, %v128
    %v139 = vsel %vm133, %v137, %v129
    %v140 = vsel %vm134, %v137, %v130
    %v141 = vsel %vm135, %v137, %v131
    %v142 = vand.u32 %v88, 2147483647
    %v143 = vand.u32 %v89, 2147483647
    %v144 = vand.u32 %v90, 2147483647
    %v145 = vand.u32 %v91, 2147483647
    %vm146 = vcmp.lt.s32.totalorder %v142, %v138
    %vm147 = vcmp.lt.s32.totalorder %v143, %v139
    %vm148 = vcmp.lt.s32.totalorder %v144, %v140
    %vm149 = vcmp.lt.s32.totalorder %v145, %v141
    %v150 = vxor.u32 %v88, 1663755691
    %v151 = vxor.u32 %v89, 1663755691
    %v152 = vxor.u32 %v90, 1663755691
    %v153 = vxor.u32 %v91, 1663755691
    %v154 = vshrl.u32 %v150, 16
    %v155 = vshrl.u32 %v151, 16
    %v156 = vshrl.u32 %v152, 16
    %v157 = vshrl.u32 %v153, 16
    %v158 = vxor.u32 %v150, %v154
    %v159 = vxor.u32 %v151, %v155
    %v160 = vxor.u32 %v152, %v156
    %v161 = vxor.u32 %v153, %v157
    %v162 = vmul.u32 %v158, 2246822507
    %v163 = vmul.u32 %v159, 2246822507
    %v164 = vmul.u32 %v160, 2246822507
    %v165 = vmul.u32 %v161, 2246822507
    %v166 = vshrl.u32 %v162, 13
    %v167 = vshrl.u32 %v163, 13
    %v168 = vshrl.u32 %v164, 13
    %v169 = vshrl.u32 %v165, 13
    %v170 = vxor.u32 %v162, %v166
    %v171 = vxor.u32 %v163, %v167
    %v172 = vxor.u32 %v164, %v168
    %v173 = vxor.u32 %v165, %v169
    %v174 = vmul.u32 %v170, 3266489909
    %v175 = vmul.u32 %v171, 3266489909
    %v176 = vmul.u32 %v172, 3266489909
    %v177 = vmul.u32 %v173, 3266489909
    %v178 = vshrl.u32 %v174, 16
    %v179 = vshrl.u32 %v175, 16
    %v180 = vshrl.u32 %v176, 16
    %v181 = vshrl.u32 %v177, 16
    %v182 = vxor.u32 %v174, %v178
    %v183 = vxor.u32 %v175, %v179
    %v184 = vxor.u32 %v176, %v180
    %v185 = vxor.u32 %v177, %v181
    %v186 = vand.u32 %v182, 65535
    %v187 = vand.u32 %v183, 65535
    %v188 = vand.u32 %v184, 65535
    %v189 = vand.u32 %v185, 65535
    %v190 = vmul.u32 %v186, 4
    %v191 = vmul.u32 %v187, 4
    %v192 = vmul.u32 %v188, 4
    %v193 = vmul.u32 %v189, 4
    %v194 = vshrl.u32 %v190, 16
    %v195 = vshrl.u32 %v191, 16
    %v196 = vshrl.u32 %v192, 16
    %v197 = vshrl.u32 %v193, 16
    %vm198 = vcmp.ge.s32.totalorder %v194, %v34
    %vm199 = vcmp.ge.s32.totalorder %v195, %v35
    %vm200 = vcmp.ge.s32.totalorder %v196, %v36
    %vm201 = vcmp.ge.s32.totalorder %v197, %v37
    %v202 = vsel %vm198, 1, 0
    %v203 = vsel %vm199, 1, 0
    %v204 = vsel %vm200, 1, 0
    %v205 = vsel %vm201, 1, 0
    %v206 = vadd.s32 %v194, %v202
    %v207 = vadd.s32 %v195, %v203
    %v208 = vadd.s32 %v196, %v204
    %v209 = vadd.s32 %v197, %v205
    %v210 = vsel %vm146, %v206, %v34
    %v211 = vsel %vm147, %v207, %v35
    %v212 = vsel %vm148, %v208, %v36
    %v213 = vsel %vm149, %v209, %v37
    %214 = vst [vmem:[#allocation8] sm:$0xff] %v210
    %215 = vst [vmem:[#allocation8 + $0x8] sm:$0xff] %v211
    %216 = vst [vmem:[#allocation8 + $0x10] sm:$0xff] %v212
    %217 = vst [vmem:[#allocation8 + $0x18] sm:$0xff] %v213
    // Predicated region
    $region10: #{tpu_custom_call.1} parent=1 // pred_check
      _
    $region11: #{tpu_custom_call.1} parent=1 // pred_check_branch
      %219 = sbr.rel (0) target = $region13
    $region12: #{tpu_custom_call.1} parent=1 // pred_region
      %221 = vsyncadd [#allocation7], 0
      %s223 = sshll.u32 [#allocation8], 4
      %s224 = int_to_ptr.vmem [resolvable:$true] %s223
      %s225 = sshll.u32 %s3, 4
      %s226 = int_to_ptr.hbm [resolvable:$true] %s225
      %228 = dma.vmem_to_hbm [thread:$0]  %s224, 512, %s226, [#allocation7]
    $region13: #{tpu_custom_call.1} parent=1 // pred_fallthru
      _
    // Predicated region
    $region14: #{tpu_custom_call.1} parent=1 // pred_check
      _
    $region15: #{tpu_custom_call.1} parent=1 // pred_check_branch
      %230 = sbr.rel (0) target = $region17
    $region16: #{tpu_custom_call.1} parent=1 // pred_region
      %232 = dma.done [#allocation7], 512
    $region17: #{tpu_custom_call.1} parent=1 // pred_fallthru
      _
    %233 = vsyncpa [#allocation6], 1
    %234 = vsyncpa [#allocation7], 1

</llo_original>
